<compile_context>
chip_gen: v5e
topology: v5e:2x2
jax: 0.10.0
libtpu: 0.0.40
codegen_flags: <defaults>
</compile_context>

<pallas_src>
from functools import partial

import jax
import jax.numpy as jnp
from jax.experimental import pallas as pl
from jax.experimental.pallas import tpu as pltpu


def _round_up(x, m):
    return ((x + m - 1) // m) * m


def _dim_pad_tile(d):
    """Padded size (128-multiple) and a tile that divides it, for a feature dim."""
    dp = _round_up(d, 128)
    if dp <= 1024:
        return dp, dp          # whole dim in one block
    dp = _round_up(d, 512)
    return dp, 512


# ----------------------------------------------------------------------------- kernels
def _linear_onek_kernel(x_ref, w_ref, b_ref, o_ref, *, apply_leaky: bool):
    """Single-K-step layer: o = x @ w + b (+ LeakyReLU), no accumulator scratch."""
    out = jnp.dot(x_ref[...], w_ref[...], preferred_element_type=jnp.float32)
    out = out + b_ref[...]                       # (1, tn) f32 broadcast
    if apply_leaky:
        out = jnp.where(out >= 0, out, jnp.float32(0.01) * out)
    o_ref[...] = out.astype(o_ref.dtype)


def _linear_acc_kernel(x_ref, w_ref, b_ref, o_ref, acc_ref, *, apply_leaky: bool):
    """Multi-K-step layer with an f32 VMEM accumulator."""
    k = pl.program_id(2)

    @pl.when(k == 0)
    def _():
        acc_ref[...] = jnp.zeros_like(acc_ref)

    acc_ref[...] += jnp.dot(
        x_ref[...], w_ref[...], preferred_element_type=jnp.float32
    )

    @pl.when(k == pl.num_programs(2) - 1)
    def _():
        out = acc_ref[...] + b_ref[...]
        if apply_leaky:
            out = jnp.where(out >= 0, out, jnp.float32(0.01) * out)
        o_ref[...] = out.astype(o_ref.dtype)


# ----------------------------------------------------------------------------- one layer
def _linear_pallas(xp, wp, bp, *, tm, tk, tn, apply_leaky, out_dtype):
    """One Linear (+ optional LeakyReLU) layer on pre-padded operands.

    xp: (Mp, Kp) bf16, wp: (Kp, Np) bf16 (== torch W.T, padded), bp: (1, Np) f32.
    """
    Mp, Kp = xp.shape
    Kp2, Np = wp.shape
    assert Kp == Kp2, (Kp, Kp2)
    assert Mp % tm == 0 and Kp % tk == 0 and Np % tn == 0

    # v7x megacore: expose >= 2 blocks on the 'parallel' axes when possible.
    if (Mp // tm) == 1 and (Np // tn) == 1 and tn % 256 == 0:
        tn //= 2

    vmem_limit = 48 * 1024 * 1024  # <= v7x 64 MiB/TC; actual use ~16 MiB worst case

    if Kp == tk:
        # Single K step: write the result directly (no acc scratch round-trip).
        grid = (Mp // tm, Np // tn)
        return pl.pallas_call(
            partial(_linear_onek_kernel, apply_leaky=apply_leaky),
            out_shape=jax.ShapeDtypeStruct((Mp, Np), out_dtype),
            grid_spec=pltpu.PrefetchScalarGridSpec(
                num_scalar_prefetch=0,
                grid=grid,
                in_specs=[
                    pl.BlockSpec((tm, tk), lambda i, j: (i, 0)),
                    pl.BlockSpec((tk, tn), lambda i, j: (0, j)),
                    pl.BlockSpec((1, tn), lambda i, j: (0, j)),
                ],
                out_specs=pl.BlockSpec((tm, tn), lambda i, j: (i, j)),
            ),
            compiler_params=pltpu.CompilerParams(
                dimension_semantics=("parallel", "parallel"),
                vmem_limit_bytes=vmem_limit,
            ),
        )(xp, wp, bp)

    grid = (Mp // tm, Np // tn, Kp // tk)
    return pl.pallas_call(
        partial(_linear_acc_kernel, apply_leaky=apply_leaky),
        out_shape=jax.ShapeDtypeStruct((Mp, Np), out_dtype),
        grid_spec=pltpu.PrefetchScalarGridSpec(
            num_scalar_prefetch=0,
            grid=grid,
            in_specs=[
                pl.BlockSpec((tm, tk), lambda i, j, k: (i, k)),
                pl.BlockSpec((tk, tn), lambda i, j, k: (k, j)),
                pl.BlockSpec((1, tn), lambda i, j, k: (0, j)),
            ],
            out_specs=pl.BlockSpec((tm, tn), lambda i, j, k: (i, j)),
            scratch_shapes=[pltpu.VMEM((tm, tn), jnp.float32)],
        ),
        compiler_params=pltpu.CompilerParams(
            dimension_semantics=("parallel", "parallel", "arbitrary"),
            vmem_limit_bytes=vmem_limit,
        ),
    )(xp, wp, bp)


# ----------------------------------------------------------------------------- forward
def _forward_fn(x, hidden_w_t, hidden_b, linear_w_t, linear_b, *,
                dim, num_labels, apply_hidden):
    """Functional forward (jit-ed). Params are pre-padded/pre-cast at init."""
    M = x.shape[0]
    x = x.reshape(M, -1)                       # x.view(x.size(0), -1)

    dim_pad, dim_tile = _dim_pad_tile(dim)
    lab_pad, lab_tile = _dim_pad_tile(num_labels)

    # Batch tile: as large as possible so weights are re-streamed from HBM at
    # most ceil(M / 1024) times; 16-row alignment for bf16 sublane packing.
    tm = min(1024, _round_up(M, 16))
    Mp = _round_up(M, tm)

    # One pad + cast of the activations; hidden activations stay padded bf16.
    xp = jnp.pad(x.astype(jnp.bfloat16), ((0, Mp - M), (0, dim_pad - dim)))

    if apply_hidden:
        for w_t, b in zip(hidden_w_t, hidden_b):
            xp = _linear_pallas(xp, w_t, b, tm=tm, tk=dim_tile, tn=dim_tile,
                                apply_leaky=True, out_dtype=jnp.bfloat16)

    out = _linear_pallas(xp, linear_w_t, linear_b, tm=tm, tk=dim_tile,
                         tn=lab_tile, apply_leaky=False, out_dtype=jnp.float32)
    return out[:M, :num_labels]


class LinearClassifier:
    """JAX/Pallas port of the PyTorch LinearClassifier (frozen-feature head)."""

    def __init__(self, dim, num_labels=1000, n_layers=1, key=None):
        if key is None:
            key = jax.random.PRNGKey(0)
        self.dim = dim
        self.num_labels = num_labels
        self.n_layers = n_layers - 1  # mirrors the PyTorch attribute / forward guard

        self.dim_pad, _ = _dim_pad_tile(dim)
        self.lab_pad, _ = _dim_pad_tile(num_labels)

        # Hidden Linear(dim, dim): store W.T padded to (Dp, Dp) bf16 and bias
        # padded to (1, Dp) f32, ONCE (no per-call weight pad/cast HBM traffic).
        self.hidden_w_t = []
        self.hidden_b = []
        for _ in range(n_layers):
            key, sub = jax.random.split(key)
            w = jax.random.normal(sub, (dim, dim), jnp.float32) * 0.01
            wt = jnp.zeros((self.dim_pad, self.dim_pad), jnp.bfloat16)
            wt = wt.at[:dim, :dim].set(w.T.astype(jnp.bfloat16))
            self.hidden_w_t.append(wt)
            self.hidden_b.append(jnp.zeros((1, self.dim_pad), jnp.float32))

        # Final Linear(dim, num_labels).
        key, sub = jax.random.split(key)
        w = jax.random.normal(sub, (num_labels, dim), jnp.float32) * 0.01
        wt = jnp.zeros((self.dim_pad, self.lab_pad), jnp.bfloat16)
        self.linear_w_t = wt.at[:dim, :num_labels].set(w.T.astype(jnp.bfloat16))
        self.linear_b = jnp.zeros((1, self.lab_pad), jnp.float32)

        # jit the whole forward (fuses wrapper pads/casts, reuses the trace).
        self._forward = jax.jit(partial(
            _forward_fn, dim=dim, num_labels=num_labels,
            apply_hidden=bool(self.n_layers)))

    def __call__(self, x):
        return self._forward(x, self.hidden_w_t, self.hidden_b,
                             self.linear_w_t, self.linear_b)


# ----------------------------------------------------------------------------- reference
def _reference_forward(model, x):
    """Pure-jnp reference mirroring the kernel's bf16-operand / f32-accumulate path."""
    d, L = model.dim, model.num_labels
    x = x.reshape(x.shape[0], -1)
    if model.n_layers:
        for wt, b in zip(model.hidden_w_t, model.hidden_b):
            h = jnp.dot(x.astype(jnp.bfloat16), wt[:d, :d],
                        preferred_element_type=jnp.float32) + b[0, :d]
            h = jnp.where(h >= 0, h, 0.01 * h)
            x = h.astype(jnp.bfloat16)
    return jnp.dot(x.astype(jnp.bfloat16), model.linear_w_t[:d, :L],
                   preferred_element_type=jnp.float32) + model.linear_b[0, :L]


if __name__ == "__main__":
    key = jax.random.PRNGKey(0)
    k_x, k_params = jax.random.split(key)

    B, dim, num_labels, n_layers = 2, 32, 16, 2
    # Frozen-feature input with trailing axes; flattened to (B, dim) = (2, 32).
    x = jax.random.normal(k_x, (B, 4, 8), jnp.float32)

    model = LinearClassifier(dim=dim, num_labels=num_labels,
                             n_layers=n_layers, key=k_params)

    out = jax.block_until_ready(model(x))

    ref = _reference_forward(model, x)
    assert out.shape == (B, num_labels)
    assert out.dtype == jnp.float32
    assert jnp.allclose(out, ref, atol=1e-4, rtol=1e-3), \
        float(jnp.max(jnp.abs(out - ref)))

    print("KERNEL_OK")
</pallas_src>

<mosaic_0001>
module attributes {stable_mosaic.version = 11 : i64} {
  func.func @_linear_onek_kernel(%arg0: i32, %arg1: i32, %arg2: memref<16x128xbf16, #tpu.memory_space<vmem>>, %arg3: memref<128x128xbf16, #tpu.memory_space<vmem>>, %arg4: memref<1x128xf32, #tpu.memory_space<vmem>>, %arg5: memref<16x128xbf16, #tpu.memory_space<vmem>>) attributes {dimension_semantics = [#tpu.dimension_semantics<parallel>, #tpu.dimension_semantics<parallel>], iteration_bounds = array<i64: 1, 1>, scalar_prefetch = 0 : i64, scratch_operands = 0 : i64, tpu.core_type = #tpu.core_type<tc>, window_params = [{transform_indices = @transform_0, window_bounds = array<i64: 16, 128>}, {transform_indices = @transform_1, window_bounds = array<i64: 128, 128>}, {transform_indices = @transform_2, window_bounds = array<i64: 1, 128>}, {transform_indices = @transform_3, window_bounds = array<i64: 16, 128>}]} {
    %c0 = arith.constant 0 : index
    %c0_0 = arith.constant 0 : index
    %0 = vector.load %arg2[%c0, %c0_0] : memref<16x128xbf16, #tpu.memory_space<vmem>>, vector<16x128xbf16>
    %c0_1 = arith.constant 0 : index
    %c0_2 = arith.constant 0 : index
    %1 = vector.load %arg3[%c0_1, %c0_2] : memref<128x128xbf16, #tpu.memory_space<vmem>>, vector<128x128xbf16>
    %cst = arith.constant dense<0.000000e+00> : vector<16x128xf32>
    %2 = tpu.matmul %0, %1, %cst {dimension_numbers = #tpu.dot_dimension_numbers<[1], [0], [0], [1], [0, 0, 1, 1], [], []>} : vector<16x128xbf16>, vector<128x128xbf16>, vector<16x128xf32> -> vector<16x128xf32>
    %c0_3 = arith.constant 0 : index
    %c0_4 = arith.constant 0 : index
    %3 = vector.load %arg4[%c0_3, %c0_4] : memref<1x128xf32, #tpu.memory_space<vmem>>, vector<1x128xf32>
    %4 = vector.broadcast %3 : vector<1x128xf32> to vector<16x128xf32>
    %5 = arith.addf %2, %4 : vector<16x128xf32>
    %cst_5 = arith.constant 0.000000e+00 : f32
    %6 = vector.broadcast %cst_5 : f32 to vector<16x128xf32>
    %7 = arith.cmpf oge, %5, %6 : vector<16x128xf32>
    %cst_6 = arith.constant 0.00999999977 : f32
    %8 = vector.broadcast %cst_6 : f32 to vector<16x128xf32>
    %9 = arith.mulf %8, %5 : vector<16x128xf32>
    %10 = arith.select %7, %5, %9 : vector<16x128xi1>, vector<16x128xf32>
    %11 = arith.truncf %10 : vector<16x128xf32> to vector<16x128xbf16>
    %c0_7 = arith.constant 0 : index
    %c0_8 = arith.constant 0 : index
    %12 = vector.load %arg5[%c0_7, %c0_8] : memref<16x128xbf16, #tpu.memory_space<vmem>>, vector<16x128xbf16>
    tpu.vector_store %arg5[%c0_7, %c0_8], %11 {strides = array<i32>} : memref<16x128xbf16, #tpu.memory_space<vmem>>, vector<16x128xbf16>,
    return
  }
  func.func @transform_0(%arg0: i32, %arg1: i32) -> (i32, i32) {
    %c0_i32 = arith.constant 0 : i32
    %c0_i32_0 = arith.constant 0 : i32
    return %arg0, %c0_i32 : i32, i32
  }
  func.func @transform_1(%arg0: i32, %arg1: i32) -> (i32, i32) {
    %c0_i32 = arith.constant 0 : i32
    %c0_i32_0 = arith.constant 0 : i32
    return %c0_i32, %arg1 : i32, i32
  }
  func.func @transform_2(%arg0: i32, %arg1: i32) -> (i32, i32) {
    %c0_i32 = arith.constant 0 : i32
    %c0_i32_0 = arith.constant 0 : i32
    return %c0_i32, %arg1 : i32, i32
  }
  func.func @transform_3(%arg0: i32, %arg1: i32) -> (i32, i32) {
    %c0_i32 = arith.constant 0 : i32
    return %arg0, %arg1 : i32, i32
  }
}

module attributes {stable_mosaic.version = 11 : i64} {
  func.func @_linear_onek_kernel(%arg0: i32, %arg1: i32, %arg2: memref<16x128xbf16, #tpu.memory_space<vmem>>, %arg3: memref<128x128xbf16, #tpu.memory_space<vmem>>, %arg4: memref<1x128xf32, #tpu.memory_space<vmem>>, %arg5: memref<16x128xf32, #tpu.memory_space<vmem>>) attributes {dimension_semantics = [#tpu.dimension_semantics<parallel>, #tpu.dimension_semantics<parallel>], iteration_bounds = array<i64: 1, 1>, scalar_prefetch = 0 : i64, scratch_operands = 0 : i64, tpu.core_type = #tpu.core_type<tc>, window_params = [{transform_indices = @transform_0, window_bounds = array<i64: 16, 128>}, {transform_indices = @transform_1, window_bounds = array<i64: 128, 128>}, {transform_indices = @transform_2, window_bounds = array<i64: 1, 128>}, {transform_indices = @transform_3, window_bounds = array<i64: 16, 128>}]} {
    %c0 = arith.constant 0 : index
    %c0_0 = arith.constant 0 : index
    %0 = vector.load %arg2[%c0, %c0_0] : memref<16x128xbf16, #tpu.memory_space<vmem>>, vector<16x128xbf16>
    %c0_1 = arith.constant 0 : index
    %c0_2 = arith.constant 0 : index
    %1 = vector.load %arg3[%c0_1, %c0_2] : memref<128x128xbf16, #tpu.memory_space<vmem>>, vector<128x128xbf16>
    %cst = arith.constant dense<0.000000e+00> : vector<16x128xf32>
    %2 = tpu.matmul %0, %1, %cst {dimension_numbers = #tpu.dot_dimension_numbers<[1], [0], [0], [1], [0, 0, 1, 1], [], []>} : vector<16x128xbf16>, vector<128x128xbf16>, vector<16x128xf32> -> vector<16x128xf32>
    %c0_3 = arith.constant 0 : index
    %c0_4 = arith.constant 0 : index
    %3 = vector.load %arg4[%c0_3, %c0_4] : memref<1x128xf32, #tpu.memory_space<vmem>>, vector<1x128xf32>
    %4 = vector.broadcast %3 : vector<1x128xf32> to vector<16x128xf32>
    %5 = arith.addf %2, %4 : vector<16x128xf32>
    %c0_5 = arith.constant 0 : index
    %c0_6 = arith.constant 0 : index
    %6 = vector.load %arg5[%c0_5, %c0_6] : memref<16x128xf32, #tpu.memory_space<vmem>>, vector<16x128xf32>
    tpu.vector_store %arg5[%c0_5, %c0_6], %5 {strides = array<i32>} : memref<16x128xf32, #tpu.memory_space<vmem>>, vector<16x128xf32>,
    return
  }
  func.func @transform_0(%arg0: i32, %arg1: i32) -> (i32, i32) {
    %c0_i32 = arith.constant 0 : i32
    %c0_i32_0 = arith.constant 0 : i32
    return %arg0, %c0_i32 : i32, i32
  }
  func.func @transform_1(%arg0: i32, %arg1: i32) -> (i32, i32) {
    %c0_i32 = arith.constant 0 : i32
    %c0_i32_0 = arith.constant 0 : i32
    return %c0_i32, %arg1 : i32, i32
  }
  func.func @transform_2(%arg0: i32, %arg1: i32) -> (i32, i32) {
    %c0_i32 = arith.constant 0 : i32
    %c0_i32_0 = arith.constant 0 : i32
    return %c0_i32, %arg1 : i32, i32
  }
  func.func @transform_3(%arg0: i32, %arg1: i32) -> (i32, i32) {
    %c0_i32 = arith.constant 0 : i32
    return %arg0, %arg1 : i32, i32
  }
}

</mosaic_0001>

<llo_original>
// kernel: _forward_fn.5
$region0: #{_forward_fn.5}
  #allocation0 [shape = 'u32[]', space=smem, size = 0x4, offset = 0x4, fixed_abs, tag = 'smem constant byte address 0x4 - core index']
  #allocation1 [shape = 'u32[72,128]{1,0:T(1,128)}', space=vmem, size = 0x9000, scoped, tag = 'internal scratch']
  %s0 = inlined_call_operand.vmem [shape: bf16[16,128], index: 0, kind: input, shape index: {}]
  %s1 = inlined_call_operand.hbm [shape: bf16[128,128], index: 1, kind: input, shape index: {}]
  %s2 = inlined_call_operand.vmem [shape: f32[1,128], index: 2, kind: input, shape index: {}]
  %s3 = inlined_call_operand.vmem [shape: f32[16,128], index: 3, kind: output, shape index: {}]
  %s4 = sld [smem:[#allocation0]]
  $region26: #{_forward_fn.5} parent=0
    _
  %s6 = ssub.s32 1, %s4
  %s7 = scalar_select 0, %s6, %s4
  $region1: #{_forward_fn.5} parent=0
    #allocation2 [shape = 'u8[32768]{0}', space=vmem, size = 0x8000, scoped, tag = 'input window, operand 1, single buffered']
    #allocation3 [shape = 's32[1]{0}', space=sflag, size = 0x4, scoped, tag = 'scoped memory for _forward_fn.5']
    %8 = vsyncpa [#allocation3], 0
    // Predicated region
    $region2: #{_forward_fn.5} parent=1 // pred_check
      _
    $region3: #{_forward_fn.5} parent=1 // pred_check_branch
      %10 = sbr.rel (0) target = $region5
    $region4: #{_forward_fn.5} parent=1 // pred_region
      _
    $region5: #{_forward_fn.5} parent=1 // pred_fallthru
      _
    // Predicated region
    $region6: #{_forward_fn.5} parent=1 // pred_check
      _
    $region7: #{_forward_fn.5} parent=1 // pred_check_branch
      %12 = sbr.rel (0) target = $region9
    $region8: #{_forward_fn.5} parent=1 // pred_region
      %14 = vsyncadd [#allocation3], 0
      %s15 = sshll.u32 %s1, 4
      %s16 = int_to_ptr.hbm [resolvable:$true] %s15
      %s17 = sshll.u32 [#allocation2], 4
      %s18 = int_to_ptr.vmem [resolvable:$true] %s17
      %23 = dma.hbm_to_vmem [thread:$0]  %s16, 1024, %s18, [#allocation3], 64, 64, 4
    $region9: #{_forward_fn.5} parent=1 // pred_fallthru
      _
    // Predicated region
    $region10: #{_forward_fn.5} parent=1 // pred_check
      _
    $region11: #{_forward_fn.5} parent=1 // pred_check_branch
      %25 = sbr.rel (0) target = $region13
    $region12: #{_forward_fn.5} parent=1 // pred_region
      _
    $region13: #{_forward_fn.5} parent=1 // pred_fallthru
      _
    // Predicated region
    $region14: #{_forward_fn.5} parent=1 // pred_check
      _
    $region15: #{_forward_fn.5} parent=1 // pred_check_branch
      %27 = sbr.rel (0) target = $region17
    $region16: #{_forward_fn.5} parent=1 // pred_region
      %29 = dma.done [#allocation3], 1024
    $region17: #{_forward_fn.5} parent=1 // pred_fallthru
      _
    %v30 = vld [vmem:[%s0] sm:$0xf]
    %v31 = vld [vmem:[%s0 + $0x4] sm:$0xf]
    %v32 = vld [vmem:[#allocation2] sm:$0xf]
    %v33 = vld [vmem:[#allocation2 + $0x4] sm:$0xf]
    %v34 = vld [vmem:[#allocation2 + $0x8] sm:$0xf]
    %v35 = vld [vmem:[#allocation2 + $0xc] sm:$0xf]
    %v36 = vld [vmem:[#allocation2 + $0x10] sm:$0xf]
    %v37 = vld [vmem:[#allocation2 + $0x14] sm:$0xf]
    %v38 = vld [vmem:[#allocation2 + $0x18] sm:$0xf]
    %v39 = vld [vmem:[#allocation2 + $0x1c] sm:$0xf]
    %v40 = vld [vmem:[#allocation2 + $0x20] sm:$0xf]
    %v41 = vld [vmem:[#allocation2 + $0x24] sm:$0xf]
    %v42 = vld [vmem:[#allocation2 + $0x28] sm:$0xf]
    %v43 = vld [vmem:[#allocation2 + $0x2c] sm:$0xf]
    %v44 = vld [vmem:[#allocation2 + $0x30] sm:$0xf]
    %v45 = vld [vmem:[#allocation2 + $0x34] sm:$0xf]
    %v46 = vld [vmem:[#allocation2 + $0x38] sm:$0xf]
    %v47 = vld [vmem:[#allocation2 + $0x3c] sm:$0xf]
    %v48 = vld [vmem:[%s2] sm:$0x1]
    %v50 = vperm.slane %v48, 0
    %v54 = vunpack.c.l.b16 %v30
    %v55 = vunpack.c.l.b16 %v31
    %v56 = vpack.c.b16 %v55, %v54
    %v74 = vunpack.c.l.b16 %v32
    %v75 = vunpack.c.l.b16 %v33
    %v76 = vunpack.c.l.b16 %v34
    %v77 = vunpack.c.l.b16 %v35
    %v78 = vunpack.c.l.b16 %v36
    %v79 = vunpack.c.l.b16 %v37
    %v80 = vunpack.c.l.b16 %v38
    %v81 = vunpack.c.l.b16 %v39
    %v82 = vunpack.c.l.b16 %v40
    %v83 = vunpack.c.l.b16 %v41
    %v84 = vunpack.c.l.b16 %v42
    %v85 = vunpack.c.l.b16 %v43
    %v86 = vunpack.c.l.b16 %v44
    %v87 = vunpack.c.l.b16 %v45
    %v88 = vunpack.c.l.b16 %v46
    %v89 = vunpack.c.l.b16 %v47
    %v90 = vpack.c.b16 %v75, %v74
    %v91 = vpack.c.b16 %v77, %v76
    %v92 = vpack.c.b16 %v79, %v78
    %v93 = vpack.c.b16 %v81, %v80
    %v94 = vpack.c.b16 %v83, %v82
    %v95 = vpack.c.b16 %v85, %v84
    %v96 = vpack.c.b16 %v87, %v86
    %v97 = vpack.c.b16 %v89, %v88
    %106 = vmatpush.bf16.msra.mxu0 %v97
    %107 = vmatpush.bf16.msra.mxu0 %v96
    %108 = vmatpush.bf16.msra.mxu0 %v95
    %109 = vmatpush.bf16.msra.mxu0 %v94
    %110 = vmatpush.bf16.msra.mxu0 %v93
    %111 = vmatpush.bf16.msra.mxu0 %v92
    %112 = vmatpush.bf16.msra.mxu0 %v91
    %113 = vmatpush.bf16.msra.mxu0 %v90
    %114 = vmatmul.bf16.gmra.mxu0 %v56
    %v115 = vpop.f32.mrf.mxu0
    %v116 = vadd.f32 %v50, %v115
    %v117 = vpop.f32.mrf.mxu0
    %v118 = vadd.f32 %v50, %v117
    %119 = vdwg.mxu0
    %120 = vst [vmem:[%s3] sm:$0xff] %v116
    %121 = vst [vmem:[%s3 + $0x8] sm:$0xff] %v118
    // Predicated region
    $region18: #{_forward_fn.5} parent=1 // pred_check
      _
    $region19: #{_forward_fn.5} parent=1 // pred_check_branch
      %123 = sbr.rel (0) target = $region21
    $region20: #{_forward_fn.5} parent=1 // pred_region
      _
    $region21: #{_forward_fn.5} parent=1 // pred_fallthru
      _
    // Predicated region
    $region22: #{_forward_fn.5} parent=1 // pred_check
      _
    $region23: #{_forward_fn.5} parent=1 // pred_check_branch
      %125 = sbr.rel (0) target = $region25
    $region24: #{_forward_fn.5} parent=1 // pred_region
      _
    $region25: #{_forward_fn.5} parent=1 // pred_fallthru
      _
    %126 = vsyncpa [#allocation3], 1

// kernel: _forward_fn.3
$region0: #{_forward_fn.3}
  #allocation0 [shape = 'u32[]', space=smem, size = 0x4, offset = 0x4, fixed_abs, tag = 'smem constant byte address 0x4 - core index']
  #allocation1 [shape = 'u32[72,128]{1,0:T(1,128)}', space=vmem, size = 0x9000, scoped, tag = 'internal scratch']
  %s0 = inlined_call_operand.vmem [shape: bf16[16,128], index: 0, kind: input, shape index: {}]
  %s1 = inlined_call_operand.hbm [shape: bf16[128,128], index: 1, kind: input, shape index: {}]
  %s2 = inlined_call_operand.vmem [shape: f32[1,128], index: 2, kind: input, shape index: {}]
  %s3 = inlined_call_operand.vmem [shape: bf16[16,128], index: 3, kind: output, shape index: {}]
  %s4 = sld [smem:[#allocation0]]
  $region26: #{_forward_fn.3} parent=0
    _
  %s6 = ssub.s32 1, %s4
  %s7 = scalar_select 0, %s6, %s4
  $region1: #{_forward_fn.3} parent=0
    #allocation2 [shape = 'u8[32768]{0}', space=vmem, size = 0x8000, scoped, tag = 'input window, operand 1, single buffered']
    #allocation3 [shape = 's32[1]{0}', space=sflag, size = 0x4, scoped, tag = 'scoped memory for _forward_fn.3']
    %8 = vsyncpa [#allocation3], 0
    // Predicated region
    $region2: #{_forward_fn.3} parent=1 // pred_check
      _
    $region3: #{_forward_fn.3} parent=1 // pred_check_branch
      %10 = sbr.rel (0) target = $region5
    $region4: #{_forward_fn.3} parent=1 // pred_region
      _
    $region5: #{_forward_fn.3} parent=1 // pred_fallthru
      _
    // Predicated region
    $region6: #{_forward_fn.3} parent=1 // pred_check
      _
    $region7: #{_forward_fn.3} parent=1 // pred_check_branch
      %12 = sbr.rel (0) target = $region9
    $region8: #{_forward_fn.3} parent=1 // pred_region
      %14 = vsyncadd [#allocation3], 0
      %s15 = sshll.u32 %s1, 4
      %s16 = int_to_ptr.hbm [resolvable:$true] %s15
      %s17 = sshll.u32 [#allocation2], 4
      %s18 = int_to_ptr.vmem [resolvable:$true] %s17
      %23 = dma.hbm_to_vmem [thread:$0]  %s16, 1024, %s18, [#allocation3], 64, 64, 4
    $region9: #{_forward_fn.3} parent=1 // pred_fallthru
      _
    // Predicated region
    $region10: #{_forward_fn.3} parent=1 // pred_check
      _
    $region11: #{_forward_fn.3} parent=1 // pred_check_branch
      %25 = sbr.rel (0) target = $region13
    $region12: #{_forward_fn.3} parent=1 // pred_region
      _
    $region13: #{_forward_fn.3} parent=1 // pred_fallthru
      _
    // Predicated region
    $region14: #{_forward_fn.3} parent=1 // pred_check
      _
    $region15: #{_forward_fn.3} parent=1 // pred_check_branch
      %27 = sbr.rel (0) target = $region17
    $region16: #{_forward_fn.3} parent=1 // pred_region
      %29 = dma.done [#allocation3], 1024
    $region17: #{_forward_fn.3} parent=1 // pred_fallthru
      _
    %v30 = vld [vmem:[%s0] sm:$0xf]
    %v31 = vld [vmem:[%s0 + $0x4] sm:$0xf]
    %v32 = vld [vmem:[#allocation2] sm:$0xf]
    %v33 = vld [vmem:[#allocation2 + $0x4] sm:$0xf]
    %v34 = vld [vmem:[#allocation2 + $0x8] sm:$0xf]
    %v35 = vld [vmem:[#allocation2 + $0xc] sm:$0xf]
    %v36 = vld [vmem:[#allocation2 + $0x10] sm:$0xf]
    %v37 = vld [vmem:[#allocation2 + $0x14] sm:$0xf]
    %v38 = vld [vmem:[#allocation2 + $0x18] sm:$0xf]
    %v39 = vld [vmem:[#allocation2 + $0x1c] sm:$0xf]
    %v40 = vld [vmem:[#allocation2 + $0x20] sm:$0xf]
    %v41 = vld [vmem:[#allocation2 + $0x24] sm:$0xf]
    %v42 = vld [vmem:[#allocation2 + $0x28] sm:$0xf]
    %v43 = vld [vmem:[#allocation2 + $0x2c] sm:$0xf]
    %v44 = vld [vmem:[#allocation2 + $0x30] sm:$0xf]
    %v45 = vld [vmem:[#allocation2 + $0x34] sm:$0xf]
    %v46 = vld [vmem:[#allocation2 + $0x38] sm:$0xf]
    %v47 = vld [vmem:[#allocation2 + $0x3c] sm:$0xf]
    %v48 = vld [vmem:[%s2] sm:$0x1]
    %v50 = vperm.slane %v48, 0
    %v54 = vunpack.c.l.b16 %v30
    %v55 = vunpack.c.l.b16 %v31
    %v56 = vpack.c.b16 %v55, %v54
    %v74 = vunpack.c.l.b16 %v32
    %v75 = vunpack.c.l.b16 %v33
    %v76 = vunpack.c.l.b16 %v34
    %v77 = vunpack.c.l.b16 %v35
    %v78 = vunpack.c.l.b16 %v36
    %v79 = vunpack.c.l.b16 %v37
    %v80 = vunpack.c.l.b16 %v38
    %v81 = vunpack.c.l.b16 %v39
    %v82 = vunpack.c.l.b16 %v40
    %v83 = vunpack.c.l.b16 %v41
    %v84 = vunpack.c.l.b16 %v42
    %v85 = vunpack.c.l.b16 %v43
    %v86 = vunpack.c.l.b16 %v44
    %v87 = vunpack.c.l.b16 %v45
    %v88 = vunpack.c.l.b16 %v46
    %v89 = vunpack.c.l.b16 %v47
    %v90 = vpack.c.b16 %v75, %v74
    %v91 = vpack.c.b16 %v77, %v76
    %v92 = vpack.c.b16 %v79, %v78
    %v93 = vpack.c.b16 %v81, %v80
    %v94 = vpack.c.b16 %v83, %v82
    %v95 = vpack.c.b16 %v85, %v84
    %v96 = vpack.c.b16 %v87, %v86
    %v97 = vpack.c.b16 %v89, %v88
    %106 = vmatpush.bf16.msra.mxu0 %v97
    %107 = vmatpush.bf16.msra.mxu0 %v96
    %108 = vmatpush.bf16.msra.mxu0 %v95
    %109 = vmatpush.bf16.msra.mxu0 %v94
    %110 = vmatpush.bf16.msra.mxu0 %v93
    %111 = vmatpush.bf16.msra.mxu0 %v92
    %112 = vmatpush.bf16.msra.mxu0 %v91
    %113 = vmatpush.bf16.msra.mxu0 %v90
    %114 = vmatmul.bf16.gmra.mxu0 %v56
    %v115 = vpop.f32.mrf.mxu0
    %v116 = vadd.f32 %v50, %v115
    %v117 = vpop.f32.mrf.mxu0
    %v118 = vadd.f32 %v50, %v117
    %119 = vdwg.mxu0
    %vm120 = vcmp.ge.f32.partialorder %v116, 0.0
    %vm121 = vcmp.ge.f32.partialorder %v118, 0.0
    %v122 = vmul.f32 %v116, 0.01
    %v123 = vmul.f32 %v118, 0.01
    %v124 = vsel %vm120, %v116, %v122
    %v125 = vsel %vm121, %v118, %v123
    %v126 = vpack.c.bf16 %v124, %v124
    %v127 = vpack.c.bf16 %v125, %v125
    %128 = vst [vmem:[%s3] sm:$0xf] %v126
    %129 = vst [vmem:[%s3 + $0x4] sm:$0xf] %v127
    // Predicated region
    $region18: #{_forward_fn.3} parent=1 // pred_check
      _
    $region19: #{_forward_fn.3} parent=1 // pred_check_branch
      %131 = sbr.rel (0) target = $region21
    $region20: #{_forward_fn.3} parent=1 // pred_region
      _
    $region21: #{_forward_fn.3} parent=1 // pred_fallthru
      _
    // Predicated region
    $region22: #{_forward_fn.3} parent=1 // pred_check
      _
    $region23: #{_forward_fn.3} parent=1 // pred_check_branch
      %133 = sbr.rel (0) target = $region25
    $region24: #{_forward_fn.3} parent=1 // pred_region
      _
    $region25: #{_forward_fn.3} parent=1 // pred_fallthru
      _
    %134 = vsyncpa [#allocation3], 1

</llo_original>
